<compile_context>
chip_gen: v6e
topology: v6e:2x2x1
jax: 0.10.0
libtpu: 0.0.40
codegen_flags: <defaults>
</compile_context>

<pallas_src>
import functools

import jax
import jax.numpy as jnp
from jax.experimental import pallas as pl
from jax.experimental.pallas import tpu as pltpu


def _fasttext_kernel(emb_ref, w_ref, b_ref, out_ref, acc_ref):
    # emb_ref: [TB, TS, E_pad] (compute dtype, e.g. bf16)
    # w_ref:   [E_pad, O_pad]  f32, already scaled by 1/seq_len
    # b_ref:   [1, O_pad]      f32
    # out_ref: [TB, O_pad]     f32
    # acc_ref: [TB, E_pad]     f32 scratch, persists across the seq grid axis
    si = pl.program_id(1)

    @pl.when(si == 0)
    def _init():
        acc_ref[...] = jnp.zeros_like(acc_ref)

    # Raw sum over this sequence tile; cast to f32 before accumulating
    # (bf16 stream, f32 accumulation -> works on v5e's f32-only VPU too).
    acc_ref[...] += jnp.sum(emb_ref[...].astype(jnp.float32), axis=1)

    @pl.when(si == pl.num_programs(1) - 1)
    def _finalize():
        # fc: pooled @ W^T + b   (the 1/seq_len mean is folded into W^T)
        out = jnp.dot(acc_ref[...], w_ref[...],
                      preferred_element_type=jnp.float32) + b_ref[...]
        out_ref[...] = out.astype(out_ref.dtype)


def _ceil_to(x, m):
    return ((x + m - 1) // m) * m


def fasttext_forward(text, embedding_table, fc_weight, fc_bias,
                     compute_dtype=jnp.bfloat16):
    """text: [seq_len, batch] int32; embedding_table: [vocab, emb];
    fc_weight: [out_dim, emb] (PyTorch layout); fc_bias: [out_dim]."""
    seq_len, batch = text.shape
    _, emb_dim = embedding_table.shape
    out_dim = fc_weight.shape[0]

    LANE = 128
    SUB = 8

    # Lane-dense padding of the feature dims.
    e_pad = _ceil_to(emb_dim, LANE)
    o_pad = _ceil_to(out_dim, LANE)

    # Batch tile (rows of the pooled tile / M of the fc matmul).
    tb = min(_ceil_to(batch, SUB), 128)
    b_pad = _ceil_to(batch, tb)

    # Seq tile: keep the double-buffered embedding stream under ~12 MiB so the
    # same tiling fits the 32 MiB scoped-VMEM default on v5e/v6e/v7x.
    itemsize = jnp.dtype(compute_dtype).itemsize
    ts_budget = (12 * 1024 * 1024) // (2 * tb * e_pad * itemsize)
    ts_budget = max(SUB, (ts_budget // SUB) * SUB)
    ts = min(_ceil_to(seq_len, SUB), ts_budget, 512)
    s_pad = _ceil_to(seq_len, ts)

    # ---- host-side glue: gather (batch-major, no transpose pass) + padding ----
    table = embedding_table.astype(compute_dtype)
    if e_pad != emb_dim:
        table = jnp.pad(table, ((0, 0), (0, e_pad - emb_dim)))
    embedded = jnp.take(table, text.T, axis=0)          # [B, S, E_pad], compute dtype
    if (b_pad, s_pad) != (batch, seq_len):
        embedded = jnp.pad(
            embedded, ((0, b_pad - batch), (0, s_pad - seq_len), (0, 0)))

    # Fold the 1/seq_len mean into W^T so the kernel accumulates raw sums only.
    w_t = (jnp.transpose(fc_weight).astype(jnp.float32) / float(seq_len))
    w_t = jnp.pad(w_t, ((0, e_pad - emb_dim), (0, o_pad - out_dim)))      # [E_pad, O_pad]
    b = jnp.pad(fc_bias.astype(jnp.float32), (0, o_pad - out_dim))
    b = b.reshape(1, o_pad)                                               # [1, O_pad]

    grid = (b_pad // tb, s_pad // ts)

    out = pl.pallas_call(
        _fasttext_kernel,
        out_shape=jax.ShapeDtypeStruct((b_pad, o_pad), jnp.float32),
        grid_spec=pltpu.PrefetchScalarGridSpec(
            num_scalar_prefetch=0,
            grid=grid,
            in_specs=[
                pl.BlockSpec((tb, ts, e_pad), lambda bi, si: (bi, si, 0)),
                pl.BlockSpec((e_pad, o_pad), lambda bi, si: (0, 0)),
                pl.BlockSpec((1, o_pad), lambda bi, si: (0, 0)),
            ],
            out_specs=pl.BlockSpec((tb, o_pad), lambda bi, si: (bi, 0)),
            scratch_shapes=[pltpu.VMEM((tb, e_pad), jnp.float32)],
        ),
        compiler_params=pltpu.CompilerParams(
            dimension_semantics=("parallel", "arbitrary"),
            vmem_limit_bytes=32 * 1024 * 1024,
        ),
    )(embedded, w_t, b)

    return out[:batch, :out_dim]


if __name__ == "__main__":
    # Small, deterministic configuration consistent with the module.
    VOCAB_SIZE = 100
    EMBEDDING_DIM = 32
    OUTPUT_DIM = 2
    PAD_IDX = 0
    SEQ_LEN = 8
    BATCH = 2

    key = jax.random.PRNGKey(0)
    k_emb, k_w, k_b, k_text = jax.random.split(key, 4)

    # nn.Embedding(vocab, emb, padding_idx=pad_idx): pad row is zeroed.
    embedding_table = jax.random.normal(k_emb, (VOCAB_SIZE, EMBEDDING_DIM),
                                        dtype=jnp.float32)
    embedding_table = embedding_table.at[PAD_IDX].set(0.0)

    # nn.Linear(embedding_dim, output_dim): weight [O, E], bias [O].
    fc_weight = 0.1 * jax.random.normal(k_w, (OUTPUT_DIM, EMBEDDING_DIM),
                                        dtype=jnp.float32)
    fc_bias = 0.1 * jax.random.normal(k_b, (OUTPUT_DIM,), dtype=jnp.float32)

    # text: [seq_len, batch] int tokens in [0, vocab)
    text = jax.random.randint(k_text, (SEQ_LEN, BATCH), 0, VOCAB_SIZE,
                              dtype=jnp.int32)

    # Run in f32 (exact check) and in the default bf16 streaming mode.
    out_f32 = fasttext_forward(text, embedding_table, fc_weight, fc_bias,
                               compute_dtype=jnp.float32)
    out_bf16 = fasttext_forward(text, embedding_table, fc_weight, fc_bias)
    out_f32, out_bf16 = jax.block_until_ready((out_f32, out_bf16))

    # Pure-JAX reference (matches the PyTorch module semantics).
    emb_full = jnp.take(embedding_table, text, axis=0).transpose(1, 0, 2)
    pooled_ref = emb_full.mean(axis=1)
    ref = pooled_ref @ fc_weight.T + fc_bias

    assert out_f32.shape == (BATCH, OUTPUT_DIM)
    assert out_bf16.shape == (BATCH, OUTPUT_DIM)
    assert jnp.allclose(out_f32, ref, atol=1e-5, rtol=1e-5)
    assert jnp.allclose(out_bf16, ref, atol=5e-2, rtol=5e-2)

    print("KERNEL_OK")
</pallas_src>

<mosaic_0001>
module attributes {stable_mosaic.version = 11 : i64} {
  func.func @_fasttext_kernel(%arg0: i32, %arg1: i32, %arg2: memref<8x8x128xf32, #tpu.memory_space<vmem>>, %arg3: memref<128x128xf32, #tpu.memory_space<vmem>>, %arg4: memref<1x128xf32, #tpu.memory_space<vmem>>, %arg5: memref<8x128xf32, #tpu.memory_space<vmem>>, %arg6: memref<8x128xf32, #tpu.memory_space<vmem>>) attributes {dimension_semantics = [#tpu.dimension_semantics<parallel>, #tpu.dimension_semantics<arbitrary>], iteration_bounds = array<i64: 1, 1>, scalar_prefetch = 0 : i64, scratch_operands = 1 : i64, tpu.core_type = #tpu.core_type<tc>, window_params = [{transform_indices = @transform_0, window_bounds = array<i64: 8, 8, 128>}, {pipeline_mode = #tpu.pipeline_mode<synchronous>, transform_indices = @transform_1, window_bounds = array<i64: 128, 128>}, {pipeline_mode = #tpu.pipeline_mode<synchronous>, transform_indices = @transform_2, window_bounds = array<i64: 1, 128>}, {transform_indices = @transform_3, window_bounds = array<i64: 8, 128>}]} {
    %c0_i32 = arith.constant 0 : i32
    %0 = arith.cmpi eq, %arg1, %c0_i32 : i32
    %1 = arith.extui %0 : i1 to i32
    %c0_i32_0 = arith.constant 0 : i32
    %2 = arith.cmpi ne, %1, %c0_i32_0 : i32
    scf.if %2 {
      %cst_9 = arith.constant 0.000000e+00 : f32
      %11 = vector.broadcast %cst_9 : f32 to vector<8x128xf32>
      %c0_10 = arith.constant 0 : index
      %c0_11 = arith.constant 0 : index
      %12 = vector.load %arg6[%c0_10, %c0_11] : memref<8x128xf32, #tpu.memory_space<vmem>>, vector<8x128xf32>
      tpu.vector_store %arg6[%c0_10, %c0_11], %11 {strides = array<i32>} : memref<8x128xf32, #tpu.memory_space<vmem>>, vector<8x128xf32>,
    } else {
    }
    %c0 = arith.constant 0 : index
    %c0_1 = arith.constant 0 : index
    %3 = vector.load %arg6[%c0, %c0_1] : memref<8x128xf32, #tpu.memory_space<vmem>>, vector<8x128xf32>
    %c0_2 = arith.constant 0 : index
    %c0_3 = arith.constant 0 : index
    %c0_4 = arith.constant 0 : index
    %4 = vector.load %arg2[%c0_2, %c0_3, %c0_4] : memref<8x8x128xf32, #tpu.memory_space<vmem>>, vector<8x8x128xf32>
    %cst = arith.constant dense<0.000000e+00> : vector<8x128xf32>
    %5 = vector.multi_reduction <add>, %4, %cst [1] : vector<8x8x128xf32> to vector<8x128xf32>
    %6 = arith.addf %3, %5 : vector<8x128xf32>
    %c0_5 = arith.constant 0 : index
    %c0_6 = arith.constant 0 : index
    %7 = vector.load %arg6[%c0_5, %c0_6] : memref<8x128xf32, #tpu.memory_space<vmem>>, vector<8x128xf32>
    tpu.vector_store %arg6[%c0_5, %c0_6], %6 {strides = array<i32>} : memref<8x128xf32, #tpu.memory_space<vmem>>, vector<8x128xf32>,
    %c0_i32_7 = arith.constant 0 : i32
    %8 = arith.cmpi eq, %arg1, %c0_i32_7 : i32
    %9 = arith.extui %8 : i1 to i32
    %c0_i32_8 = arith.constant 0 : i32
    %10 = arith.cmpi ne, %9, %c0_i32_8 : i32
    scf.if %10 {
      %c0_9 = arith.constant 0 : index
      %c0_10 = arith.constant 0 : index
      %11 = vector.load %arg6[%c0_9, %c0_10] : memref<8x128xf32, #tpu.memory_space<vmem>>, vector<8x128xf32>
      %c0_11 = arith.constant 0 : index
      %c0_12 = arith.constant 0 : index
      %12 = vector.load %arg3[%c0_11, %c0_12] : memref<128x128xf32, #tpu.memory_space<vmem>>, vector<128x128xf32>
      %cst_13 = arith.constant dense<0.000000e+00> : vector<8x128xf32>
      %13 = tpu.matmul %11, %12, %cst_13 {dimension_numbers = #tpu.dot_dimension_numbers<[1], [0], [0], [1], [0, 0, 1, 1], [], []>} : vector<8x128xf32>, vector<128x128xf32>, vector<8x128xf32> -> vector<8x128xf32>
      %c0_14 = arith.constant 0 : index
      %c0_15 = arith.constant 0 : index
      %14 = vector.load %arg4[%c0_14, %c0_15] : memref<1x128xf32, #tpu.memory_space<vmem>>, vector<1x128xf32>
      %15 = vector.broadcast %14 : vector<1x128xf32> to vector<8x128xf32>
      %16 = arith.addf %13, %15 : vector<8x128xf32>
      %c0_16 = arith.constant 0 : index
      %c0_17 = arith.constant 0 : index
      %17 = vector.load %arg5[%c0_16, %c0_17] : memref<8x128xf32, #tpu.memory_space<vmem>>, vector<8x128xf32>
      tpu.vector_store %arg5[%c0_16, %c0_17], %16 {strides = array<i32>} : memref<8x128xf32, #tpu.memory_space<vmem>>, vector<8x128xf32>,
    } else {
    }
    return
  }
  func.func @transform_0(%arg0: i32, %arg1: i32) -> (i32, i32, i32) {
    %c0_i32 = arith.constant 0 : i32
    %c0_i32_0 = arith.constant 0 : i32
    return %arg0, %arg1, %c0_i32 : i32, i32, i32
  }
  func.func @transform_1(%arg0: i32, %arg1: i32) -> (i32, i32) {
    %c0_i32 = arith.constant 0 : i32
    %c0_i32_0 = arith.constant 0 : i32
    %c0_i32_1 = arith.constant 0 : i32
    return %c0_i32, %c0_i32_0 : i32, i32
  }
  func.func @transform_2(%arg0: i32, %arg1: i32) -> (i32, i32) {
    %c0_i32 = arith.constant 0 : i32
    %c0_i32_0 = arith.constant 0 : i32
    %c0_i32_1 = arith.constant 0 : i32
    return %c0_i32, %c0_i32_0 : i32, i32
  }
  func.func @transform_3(%arg0: i32, %arg1: i32) -> (i32, i32) {
    %c0_i32 = arith.constant 0 : i32
    %c0_i32_0 = arith.constant 0 : i32
    return %arg0, %c0_i32 : i32, i32
  }
}

</mosaic_0001>

<llo_original>
// kernel: tpu_custom_call.1
$region0: #{tpu_custom_call.1}
  #allocation0 [shape = 'u32[]', space=smem, size = 0x4, offset = 0x4, fixed_abs, tag = 'smem constant byte address 0x4 - core index']
  #allocation1 [shape = 'u32[144,128]{1,0:T(1,128)}', space=vmem, size = 0x12000, scoped, tag = 'internal scratch']
  #allocation2 [shape = 'f32[8,128]{1,0:T(8,128)}', space=vmem, size = 0x1000, scoped, tag = 'scratch operand']
  %s0 = inlined_call_operand.hbm [shape: f32[8,8,128], index: 0, kind: input, shape index: {}]
  %s1 = inlined_call_operand.hbm [shape: f32[128,128], index: 1, kind: input, shape index: {}]
  %s2 = inlined_call_operand.vmem [shape: f32[1,128], index: 2, kind: input, shape index: {}]
  %s3 = inlined_call_operand.hbm [shape: f32[8,128], index: 3, kind: output, shape index: {}]
  %s4 = sld [smem:[#allocation0]]
  $region38: #{tpu_custom_call.1} parent=0
    _
  %s6 = ssub.s32 1, %s4
  %s7 = scalar_select 0, %s6, %s4
  $region1: #{tpu_custom_call.1} parent=0
    #allocation3 [shape = 'u8[32768]{0}', space=vmem, size = 0x8000, scoped, tag = 'input window, operand 0, single buffered']
    #allocation4 [shape = 's32[1]{0}', space=sflag, size = 0x4, scoped, tag = 'scoped memory for tpu_custom_call.1']
    #allocation5 [shape = 's32[1]{0}', space=sflag, size = 0x4, scoped, tag = 'scoped memory for tpu_custom_call.1']
    #allocation6 [shape = 'u8[65536]{0}', space=vmem, size = 0x10000, scoped, tag = 'input window, operand 1, single buffered']
    #allocation7 [shape = 's32[1]{0}', space=sflag, size = 0x4, scoped, tag = 'scoped memory for tpu_custom_call.1']
    #allocation8 [shape = 'u8[4096]{0}', space=vmem, size = 0x1000, scoped, tag = 'output window, operand 0, single buffered']
    %8 = vsyncpa [#allocation4], 0
    %9 = vsyncpa [#allocation7], 0
    %10 = vsyncpa [#allocation5], 0
    // Predicated region
    $region2: #{tpu_custom_call.1} parent=1 // pred_check
      _
    $region3: #{tpu_custom_call.1} parent=1 // pred_check_branch
      %12 = sbr.rel (0) target = $region5
    $region4: #{tpu_custom_call.1} parent=1 // pred_region
      %s14 = ssub.s32 1024, 1024
      %15 = vsyncadd [#allocation4], %s14
      %s16 = sshll.u32 [#allocation3], 4
      %s17 = int_to_ptr.vmem [resolvable:$true] %s16
      %22 = dma.hbm_to_vmem [thread:$0]  %s0, 1024, %s17, [#allocation4], 128, 128, 8
    $region5: #{tpu_custom_call.1} parent=1 // pred_fallthru
      _
    // Predicated region
    $region6: #{tpu_custom_call.1} parent=1 // pred_check
      _
    $region7: #{tpu_custom_call.1} parent=1 // pred_check_branch
      %24 = sbr.rel (0) target = $region9
    $region8: #{tpu_custom_call.1} parent=1 // pred_region
      %s26 = ssub.s32 2048, 2048
      %27 = vsyncadd [#allocation7], %s26
      %s28 = sshll.u32 [#allocation6], 4
      %s29 = int_to_ptr.vmem [resolvable:$true] %s28
      %34 = dma.hbm_to_vmem [thread:$0]  %s1, 2048, %s29, [#allocation7], 128, 128, 8
    $region9: #{tpu_custom_call.1} parent=1 // pred_fallthru
      _
    // Predicated region
    $region10: #{tpu_custom_call.1} parent=1 // pred_check
      _
    $region11: #{tpu_custom_call.1} parent=1 // pred_check_branch
      %36 = sbr.rel (0) target = $region13
    $region12: #{tpu_custom_call.1} parent=1 // pred_region
      _
    $region13: #{tpu_custom_call.1} parent=1 // pred_fallthru
      _
    // Predicated region
    $region14: #{tpu_custom_call.1} parent=1 // pred_check
      _
    $region15: #{tpu_custom_call.1} parent=1 // pred_check_branch
      %38 = sbr.rel (0) target = $region17
    $region16: #{tpu_custom_call.1} parent=1 // pred_region
      %39 = dma.done [#allocation4], 1024
    $region17: #{tpu_custom_call.1} parent=1 // pred_fallthru
      _
    // Predicated region
    $region18: #{tpu_custom_call.1} parent=1 // pred_check
      _
    $region19: #{tpu_custom_call.1} parent=1 // pred_check_branch
      %41 = sbr.rel (0) target = $region21
    $region20: #{tpu_custom_call.1} parent=1 // pred_region
      %42 = dma.done [#allocation7], 2048
    $region21: #{tpu_custom_call.1} parent=1 // pred_fallthru
      _
    %p43 = scmp.eq.s32.totalorder 0, 0
    // Predicated region
    $region22: #{tpu_custom_call.1} parent=1 // pred_check
      %p44 = pneg %p43
    $region23: #{tpu_custom_call.1} parent=1 // pred_check_branch
      %46 = sbr.rel (%p44) target = $region25
    $region24: #{tpu_custom_call.1} parent=1 // pred_region
      %47 = vst [vmem:[#allocation2] sm:$0xff] 0.0
    $region25: #{tpu_custom_call.1} parent=1 // pred_fallthru
      _
    %v48 = vld [vmem:[#allocation2] sm:$0xff]
    %v49 = vld [vmem:[#allocation3] sm:$0xff]
    %v50 = vld [vmem:[#allocation3 + $0x8] sm:$0xff]
    %v51 = vld [vmem:[#allocation3 + $0x10] sm:$0xff]
    %v52 = vld [vmem:[#allocation3 + $0x18] sm:$0xff]
    %v53 = vld [vmem:[#allocation3 + $0x20] sm:$0xff]
    %v54 = vld [vmem:[#allocation3 + $0x28] sm:$0xff]
    %v55 = vld [vmem:[#allocation3 + $0x30] sm:$0xff]
    %v56 = vld [vmem:[#allocation3 + $0x38] sm:$0xff]
    %v57 = vrot.slane %v49, 4
    %v58 = vadd.f32 %v49, %v57
    %v59 = vrot.slane %v58, 2
    %v60 = vadd.f32 %v58, %v59
    %v61 = vrot.slane %v60, 1
    %v62 = vadd.f32 %v60, %v61
    %v63 = vrot.slane %v50, 4
    %v64 = vadd.f32 %v50, %v63
    %v65 = vrot.slane %v64, 2
    %v66 = vadd.f32 %v64, %v65
    %v67 = vrot.slane %v66, 1
    %v68 = vadd.f32 %v66, %v67
    %v69 = vrot.slane %v51, 4
    %v70 = vadd.f32 %v51, %v69
    %v71 = vrot.slane %v70, 2
    %v72 = vadd.f32 %v70, %v71
    %v73 = vrot.slane %v72, 1
    %v74 = vadd.f32 %v72, %v73
    %v75 = vrot.slane %v52, 4
    %v76 = vadd.f32 %v52, %v75
    %v77 = vrot.slane %v76, 2
    %v78 = vadd.f32 %v76, %v77
    %v79 = vrot.slane %v78, 1
    %v80 = vadd.f32 %v78, %v79
    %v81 = vrot.slane %v53, 4
    %v82 = vadd.f32 %v53, %v81
    %v83 = vrot.slane %v82, 2
    %v84 = vadd.f32 %v82, %v83
    %v85 = vrot.slane %v84, 1
    %v86 = vadd.f32 %v84, %v85
    %v87 = vrot.slane %v54, 4
    %v88 = vadd.f32 %v54, %v87
    %v89 = vrot.slane %v88, 2
    %v90 = vadd.f32 %v88, %v89
    %v91 = vrot.slane %v90, 1
    %v92 = vadd.f32 %v90, %v91
    %v93 = vrot.slane %v55, 4
    %v94 = vadd.f32 %v55, %v93
    %v95 = vrot.slane %v94, 2
    %v96 = vadd.f32 %v94, %v95
    %v97 = vrot.slane %v96, 1
    %v98 = vadd.f32 %v96, %v97
    %v99 = vrot.slane %v56, 4
    %v100 = vadd.f32 %v56, %v99
    %v101 = vrot.slane %v100, 2
    %v102 = vadd.f32 %v100, %v101
    %v103 = vrot.slane %v102, 1
    %v104 = vadd.f32 %v102, %v103
    %vm113 = vcmask 1041409
    %v114 = vsel %vm113, %v68, %v62
    %vm115 = vcmask 1042434
    %v116 = vsel %vm115, %v74, %v114
    %vm117 = vcmask 1043459
    %v118 = vsel %vm117, %v80, %v116
    %vm119 = vcmask 1044484
    %v120 = vsel %vm119, %v86, %v118
    %vm121 = vcmask 1045509
    %v122 = vsel %vm121, %v92, %v120
    %vm123 = vcmask 1046534
    %v124 = vsel %vm123, %v98, %v122
    %vm125 = vcmask 1047559
    %v126 = vsel %vm125, %v104, %v124
    %v128 = vadd.f32 %v48, %v126
    %129 = vst [vmem:[#allocation2] sm:$0xff] %v128
    // Predicated region
    $region26: #{tpu_custom_call.1} parent=1 // pred_check
      %p130 = pneg %p43
    $region27: #{tpu_custom_call.1} parent=1 // pred_check_branch
      %132 = sbr.rel (%p130) target = $region29
    $region28: #{tpu_custom_call.1} parent=1 // pred_region
      %v133 = vld [vmem:[#allocation2] sm:$0xff]
      %v134 = vld [vmem:[#allocation6] sm:$0xff]
      %v135 = vld [vmem:[#allocation6 + $0x8] sm:$0xff]
      %v136 = vld [vmem:[#allocation6 + $0x10] sm:$0xff]
      %v137 = vld [vmem:[#allocation6 + $0x18] sm:$0xff]
      %v138 = vld [vmem:[#allocation6 + $0x20] sm:$0xff]
      %v139 = vld [vmem:[#allocation6 + $0x28] sm:$0xff]
      %v140 = vld [vmem:[#allocation6 + $0x30] sm:$0xff]
      %v141 = vld [vmem:[#allocation6 + $0x38] sm:$0xff]
      %v142 = vld [vmem:[#allocation6 + $0x40] sm:$0xff]
      %v143 = vld [vmem:[#allocation6 + $0x48] sm:$0xff]
      %v144 = vld [vmem:[#allocation6 + $0x50] sm:$0xff]
      %v145 = vld [vmem:[#allocation6 + $0x58] sm:$0xff]
      %v146 = vld [vmem:[#allocation6 + $0x60] sm:$0xff]
      %v147 = vld [vmem:[#allocation6 + $0x68] sm:$0xff]
      %v148 = vld [vmem:[#allocation6 + $0x70] sm:$0xff]
      %v149 = vld [vmem:[#allocation6 + $0x78] sm:$0xff]
      %v150 = vld [vmem:[%s2] sm:$0x1]
      %v152 = vlaneseq
      %v153 = vshrl.u32 %v152, 7
      %v154 = vsub.s32 0, %v153
      %v155 = vrot.slane %v150, %v154
      %157 = vmatprep.subr.mxu0 0.0
      %158 = vmatpush1.msra.mxu0 %v149
      %159 = vmatprep.subr.mxu0 0.0
      %160 = vmatpush1.msra.mxu0 %v148
      %161 = vmatprep.subr.mxu0 0.0
      %162 = vmatpush1.msra.mxu0 %v147
      %163 = vmatprep.subr.mxu0 0.0
      %164 = vmatpush1.msra.mxu0 %v146
      %165 = vmatprep.subr.mxu0 0.0
      %166 = vmatpush1.msra.mxu0 %v145
      %167 = vmatprep.subr.mxu0 0.0
      %168 = vmatpush1.msra.mxu0 %v144
      %169 = vmatprep.subr.mxu0 0.0
      %170 = vmatpush1.msra.mxu0 %v143
      %171 = vmatprep.subr.mxu0 0.0
      %172 = vmatpush1.msra.mxu0 %v142
      %173 = vmatprep.subr.mxu0 0.0
      %174 = vmatpush1.msra.mxu0 %v141
      %175 = vmatprep.subr.mxu0 0.0
      %176 = vmatpush1.msra.mxu0 %v140
      %177 = vmatprep.subr.mxu0 0.0
      %178 = vmatpush1.msra.mxu0 %v139
      %179 = vmatprep.subr.mxu0 0.0
      %180 = vmatpush1.msra.mxu0 %v138
      %181 = vmatprep.subr.mxu0 0.0
      %182 = vmatpush1.msra.mxu0 %v137
      %183 = vmatprep.subr.mxu0 0.0
      %184 = vmatpush1.msra.mxu0 %v136
      %185 = vmatprep.subr.mxu0 0.0
      %186 = vmatpush1.msra.mxu0 %v135
      %187 = vmatprep.subr.mxu0 0.0
      %188 = vmatpush1.msra.mxu0 %v134
      %189 = vmatprep.subr.mxu0 0.0
      %190 = vmatpush2.msra.mxu0 0.0
      %191 = vmatprep.subr.mxu0 0.0
      %192 = vmatpush2.msra.mxu0 0.0
      %193 = vmatprep.subr.mxu0 0.0
      %194 = vmatpush2.msra.mxu0 0.0
      %195 = vmatprep.subr.mxu0 0.0
      %196 = vmatpush2.msra.mxu0 0.0
      %197 = vmatprep.subr.mxu0 0.0
      %198 = vmatpush2.msra.mxu0 0.0
      %199 = vmatprep.subr.mxu0 0.0
      %200 = vmatpush2.msra.mxu0 0.0
      %201 = vmatprep.subr.mxu0 0.0
      %202 = vmatpush2.msra.mxu0 0.0
      %203 = vmatprep.subr.mxu0 0.0
      %204 = vmatpush2.msra.mxu0 0.0
      %205 = vmatprep.subr.mxu0 0.0
      %206 = vmatpush2.msra.mxu0 0.0
      %207 = vmatprep.subr.mxu0 0.0
      %208 = vmatpush2.msra.mxu0 0.0
      %209 = vmatprep.subr.mxu0 0.0
      %210 = vmatpush2.msra.mxu0 0.0
      %211 = vmatprep.subr.mxu0 0.0
      %212 = vmatpush2.msra.mxu0 0.0
      %213 = vmatprep.subr.mxu0 0.0
      %214 = vmatpush2.msra.mxu0 0.0
      %215 = vmatprep.subr.mxu0 0.0
      %216 = vmatpush2.msra.mxu0 0.0
      %217 = vmatprep.subr.mxu0 0.0
      %218 = vmatpush2.msra.mxu0 0.0
      %219 = vmatprep.subr.mxu0 0.0
      %220 = vmatpush2.msra.mxu0 0.0
      %221 = vmatprep.mubr.f32.mxu0 0.0
      %222 = vmatmul.mubr.f32.gmra.mxu0 %v133
      %v223 = vpop.f32.mrf.mxu0
      %v224 = vadd.f32 %v155, %v223
      %v225 = vpop.f32.mrf.mxu0
      %226 = vdwg.mxu0
      %227 = vst [vmem:[#allocation8] sm:$0xff] %v224
    $region29: #{tpu_custom_call.1} parent=1 // pred_fallthru
      _
    // Predicated region
    $region30: #{tpu_custom_call.1} parent=1 // pred_check
      _
    $region31: #{tpu_custom_call.1} parent=1 // pred_check_branch
      %229 = sbr.rel (0) target = $region33
    $region32: #{tpu_custom_call.1} parent=1 // pred_region
      %s231 = ssub.s32 128, 128
      %232 = vsyncadd [#allocation5], %s231
      %s234 = sshll.u32 [#allocation8], 4
      %s235 = int_to_ptr.vmem [resolvable:$true] %s234
      %237 = dma.vmem_to_hbm [thread:$0]  %s235, 128, %s3, [#allocation5]
    $region33: #{tpu_custom_call.1} parent=1 // pred_fallthru
      _
    // Predicated region
    $region34: #{tpu_custom_call.1} parent=1 // pred_check
      _
    $region35: #{tpu_custom_call.1} parent=1 // pred_check_branch
      %239 = sbr.rel (0) target = $region37
    $region36: #{tpu_custom_call.1} parent=1 // pred_region
      %240 = dma.done [#allocation5], 128
    $region37: #{tpu_custom_call.1} parent=1 // pred_fallthru
      _
    %241 = vsyncpa [#allocation4], 1
    %242 = vsyncpa [#allocation7], 1
    %243 = vsyncpa [#allocation5], 1

</llo_original>
